<compile_context>
chip_gen: v7x
topology: tpu7x:2x2x1
jax: 0.10.0
libtpu: 0.0.40
codegen_flags: <defaults>
</compile_context>

<pallas_src>
import jax
import jax.numpy as jnp
from jax.experimental import pallas as pl
from jax.experimental.pallas import tpu as pltpu


def pe_head_kernel(x_ref, w1_ref, b1_ref, w2t_ref, b2_ref, o_ref):
    # Hidden layer: [TB, E] @ [E, 128] on the MXU with f32 accumulation;
    # bias-add + ReLU stay in f32 on the VPU (v5e has no bf16 VALU).
    h = jnp.dot(x_ref[...], w1_ref[...], preferred_element_type=jnp.float32)
    h = jnp.maximum(h + b1_ref[...], 0.0)
    # Second layer computed directly in transposed form:
    #   out_t[o, b] = sum_k w2t[o, k] * h[b, k]      (A @ B^T, MXU-native contraction)
    # -> [O_pad, TB] tile, lane-dense along the batch axis (no 128-lane zero padding).
    out_t = jax.lax.dot_general(
        w2t_ref[...], h.astype(w2t_ref.dtype),
        dimension_numbers=(((1,), (1,)), ((), ())),
        preferred_element_type=jnp.float32)
    o_ref[...] = (out_t + b2_ref[...]).astype(o_ref.dtype)


def pe_head_forward(x, w1, b1, w2, b2, *, block_b=2048, use_bf16=True,
                    core_parallel=False):
    """Fused PEHead forward.

    x: [B, E]; w1: [E, H]; b1: [H] or [1,H]; w2: [H, O]; b2: [O] or [1,O].
    use_bf16=True streams x/w1/w2 in bf16 (f32 accumulation) -> native MXU rate on
    v6e/v7x and half the HBM traffic; weight precision is reduced accordingly.
    core_parallel=True marks the batch grid axis CORE_PARALLEL (use on v7x with >=2 tiles).
    """
    B, E = x.shape
    H = w1.shape[1]
    O = w2.shape[1]

    # ---- narrow output: pad O=5 -> 8 sublanes (NOT 128 lanes) ---------------
    O_pad = max(8, ((O + 7) // 8) * 8)
    # Second layer is passed transposed: w2t [O_pad, H], b2 [O_pad, 1].
    w2t_p = jnp.zeros((O_pad, H), jnp.float32).at[:O, :].set(jnp.transpose(w2.astype(jnp.float32)))
    b2_p = jnp.zeros((O_pad, 1), jnp.float32).at[:O, 0].set(b2.reshape(O).astype(jnp.float32))
    b1_p = b1.reshape(1, H).astype(jnp.float32)

    in_dtype = jnp.bfloat16 if use_bf16 else jnp.float32
    itemsize = jnp.dtype(in_dtype).itemsize

    # ---- batch tiling: multiple of 128 (lane-dense transposed output) -------
    TB = min(block_b, ((B + 127) // 128) * 128)
    TB = ((TB + 127) // 128) * 128
    # Keep the double-buffered x tile comfortably inside VMEM (v7x: 64 MiB total).
    while TB > 128 and 2 * TB * E * itemsize > 24 * (1 << 20):
        TB //= 2
    B_pad = pl.cdiv(B, TB) * TB
    if B_pad != B:
        x = jnp.pad(x, ((0, B_pad - B), (0, 0)))

    x_in = x.astype(in_dtype)
    w1_in = w1.astype(in_dtype)
    w2t_in = w2t_p.astype(in_dtype)

    grid = (B_pad // TB,)

    # ---- cost estimate (narrow output, bf16-aware byte counts) --------------
    flops = 2 * B_pad * E * H + 2 * B_pad * H * O_pad
    bytes_accessed = (B_pad * E * itemsize          # x stream
                      + E * H * itemsize            # w1 (resident, read once)
                      + H * 4                       # b1
                      + O_pad * H * itemsize        # w2^T
                      + O_pad * 4                   # b2
                      + O_pad * B_pad * 4)          # narrow transposed f32 output
    cost = pl.CostEstimate(flops=int(flops), transcendentals=0,
                           bytes_accessed=int(bytes_accessed))

    # ---- VMEM budget: always set an explicit scoped limit (v5e default is only
    # 16 MiB), capped per generation via the physical VMEM capacity. -----------
    vmem_need = (2 * TB * E * itemsize              # x: double-buffered stream
                 + 2 * O_pad * TB * 4               # output: double-buffered, narrow
                 + E * H * itemsize                 # w1: single-buffered (Buffered(1))
                 + O_pad * H * itemsize             # w2^T: single-buffered
                 + (H + O_pad) * 4                  # biases
                 + TB * H * 4 + TB * H * itemsize)  # live hidden activations (+ bf16 cast)
    try:
        cap = int(0.75 * pltpu.get_tpu_info().vmem_capacity_bytes)  # ~48 MiB on v7x, ~96 on v5e/v6e
    except Exception:
        cap = 48 * (1 << 20)                        # safe on every generation
    vmem_limit = int(min(cap, max(32 * (1 << 20), int(1.5 * vmem_need))))

    dim_sem = (pltpu.CORE_PARALLEL,) if core_parallel else ("parallel",)

    def make_call(resident_mode):
        if resident_mode is not None:
            def rspec(shape):
                return pl.BlockSpec(shape, lambda i: (0, 0), pipeline_mode=resident_mode)
        else:
            def rspec(shape):
                return pl.BlockSpec(shape, lambda i: (0, 0))
        in_specs = [
            pl.BlockSpec((TB, E), lambda i: (i, 0)),   # x: streamed per batch tile
            rspec((E, H)),                             # w1: resident
            rspec((1, H)),                             # b1: resident
            rspec((O_pad, H)),                         # w2^T: resident
            rspec((O_pad, 1)),                         # b2: resident
        ]
        out_spec = pl.BlockSpec((O_pad, TB), lambda i: (0, i))
        return pl.pallas_call(
            pe_head_kernel,
            out_shape=jax.ShapeDtypeStruct((O_pad, B_pad), jnp.float32),
            grid=grid,
            in_specs=in_specs,
            out_specs=out_spec,
            compiler_params=pltpu.CompilerParams(
                dimension_semantics=dim_sem,
                vmem_limit_bytes=vmem_limit,
            ),
            cost_estimate=cost,
        )

    try:
        # Resident operands single-buffered (no double buffers for constant index_maps).
        out_t = make_call(pl.Buffered(1))(x_in, w1_in, b1_p, w2t_in, b2_p)
    except Exception:
        # Fallback for JAX builds that reject pipeline_mode / Buffered(1).
        out_t = make_call(None)(x_in, w1_in, b1_p, w2t_in, b2_p)

    # Drop sublane padding of the 5-way output and batch padding; return [B, O].
    return jnp.transpose(out_t[:O, :B])


def init_params(key, emb_dim, hidden=128, out=5):
    # Deterministic init mimicking nn.Linear's uniform(-1/sqrt(fan_in), 1/sqrt(fan_in)).
    k1, k2, k3, k4 = jax.random.split(key, 4)
    s1 = 1.0 / jnp.sqrt(emb_dim)
    s2 = 1.0 / jnp.sqrt(hidden)
    w1 = jax.random.uniform(k1, (emb_dim, hidden), jnp.float32, -s1, s1)
    b1 = jax.random.uniform(k2, (1, hidden), jnp.float32, -s1, s1)
    w2 = jax.random.uniform(k3, (hidden, out), jnp.float32, -s2, s2)
    b2 = jax.random.uniform(k4, (1, out), jnp.float32, -s2, s2)
    return w1, b1, w2, b2


if __name__ == "__main__":
    key = jax.random.PRNGKey(0)
    kx, kp = jax.random.split(key)

    # B=10 deliberately not a multiple of 8/128 to exercise the tail-padding path.
    B, EMB_DIM = 10, 32
    x = jax.random.normal(kx, (B, EMB_DIM), jnp.float32)
    w1, b1, w2, b2 = init_params(kp, EMB_DIM)

    ref = jnp.maximum(x @ w1 + b1, 0.0) @ w2 + b2

    # All-f32 path (tight tolerance).
    logits_f32 = jax.block_until_ready(pe_head_forward(x, w1, b1, w2, b2, use_bf16=False))
    assert logits_f32.shape == (B, 5)
    assert jnp.allclose(logits_f32, ref, atol=1e-3, rtol=1e-3)

    # Default bf16-streaming path (native MXU rate on v6e/v7x); looser tolerance.
    logits = jax.block_until_ready(pe_head_forward(x, w1, b1, w2, b2))
    assert logits.shape == (B, 5)
    assert jnp.allclose(logits, ref, atol=1e-1, rtol=1e-1)

    # TODO(synk): PEHead.predict (embed_sequence + argmax host-side glue) is not kernel work.
    print("KERNEL_OK")
</pallas_src>

<mosaic_0001>
module attributes {stable_mosaic.version = 11 : i64} {
  func.func @pe_head_kernel(%arg0: i32, %arg1: memref<128x32xf32, #tpu.memory_space<vmem>>, %arg2: memref<32x128xf32, #tpu.memory_space<vmem>>, %arg3: memref<1x128xf32, #tpu.memory_space<vmem>>, %arg4: memref<8x128xf32, #tpu.memory_space<vmem>>, %arg5: memref<8x1xf32, #tpu.memory_space<vmem>>, %arg6: memref<8x128xf32, #tpu.memory_space<vmem>>) attributes {dimension_semantics = [#tpu.dimension_semantics<parallel>], iteration_bounds = array<i64: 1>, scalar_prefetch = 0 : i64, scratch_operands = 0 : i64, tpu.core_type = #tpu.core_type<tc>, window_params = [{transform_indices = @transform_0, window_bounds = array<i64: 128, 32>}, {pipeline_mode = #tpu.pipeline_mode<synchronous>, transform_indices = @transform_1, window_bounds = array<i64: 32, 128>}, {pipeline_mode = #tpu.pipeline_mode<synchronous>, transform_indices = @transform_2, window_bounds = array<i64: 1, 128>}, {pipeline_mode = #tpu.pipeline_mode<synchronous>, transform_indices = @transform_3, window_bounds = array<i64: 8, 128>}, {pipeline_mode = #tpu.pipeline_mode<synchronous>, transform_indices = @transform_4, window_bounds = array<i64: 8, 1>}, {transform_indices = @transform_5, window_bounds = array<i64: 8, 128>}]} {
    %c0 = arith.constant 0 : index
    %c0_0 = arith.constant 0 : index
    %0 = vector.load %arg1[%c0, %c0_0] : memref<128x32xf32, #tpu.memory_space<vmem>>, vector<128x32xf32>
    %c0_1 = arith.constant 0 : index
    %c0_2 = arith.constant 0 : index
    %1 = vector.load %arg2[%c0_1, %c0_2] : memref<32x128xf32, #tpu.memory_space<vmem>>, vector<32x128xf32>
    %cst = arith.constant dense<0.000000e+00> : vector<128x128xf32>
    %2 = tpu.matmul %0, %1, %cst {dimension_numbers = #tpu.dot_dimension_numbers<[1], [0], [0], [1], [0, 0, 1, 1], [], []>} : vector<128x32xf32>, vector<32x128xf32>, vector<128x128xf32> -> vector<128x128xf32>
    %c0_3 = arith.constant 0 : index
    %c0_4 = arith.constant 0 : index
    %3 = vector.load %arg3[%c0_3, %c0_4] : memref<1x128xf32, #tpu.memory_space<vmem>>, vector<1x128xf32>
    %4 = vector.broadcast %3 : vector<1x128xf32> to vector<128x128xf32>
    %5 = arith.addf %2, %4 : vector<128x128xf32>
    %cst_5 = arith.constant 0.000000e+00 : f32
    %6 = vector.broadcast %cst_5 : f32 to vector<128x128xf32>
    %7 = arith.maximumf %5, %6 : vector<128x128xf32>
    %c0_6 = arith.constant 0 : index
    %c0_7 = arith.constant 0 : index
    %8 = vector.load %arg4[%c0_6, %c0_7] : memref<8x128xf32, #tpu.memory_space<vmem>>, vector<8x128xf32>
    %cst_8 = arith.constant dense<0.000000e+00> : vector<8x128xf32>
    %9 = tpu.matmul %8, %7, %cst_8 {dimension_numbers = #tpu.dot_dimension_numbers<[1], [1], [0], [0], [0, 0, 1, 0], [], []>} : vector<8x128xf32>, vector<128x128xf32>, vector<8x128xf32> -> vector<8x128xf32>
    %c0_9 = arith.constant 0 : index
    %c0_10 = arith.constant 0 : index
    %10 = vector.load %arg5[%c0_9, %c0_10] : memref<8x1xf32, #tpu.memory_space<vmem>>, vector<8x1xf32>
    %11 = vector.broadcast %10 : vector<8x1xf32> to vector<8x128xf32>
    %12 = arith.addf %9, %11 : vector<8x128xf32>
    %c0_11 = arith.constant 0 : index
    %c0_12 = arith.constant 0 : index
    %13 = vector.load %arg6[%c0_11, %c0_12] : memref<8x128xf32, #tpu.memory_space<vmem>>, vector<8x128xf32>
    tpu.vector_store %arg6[%c0_11, %c0_12], %12 {strides = array<i32>} : memref<8x128xf32, #tpu.memory_space<vmem>>, vector<8x128xf32>,
    return
  }
  func.func @transform_0(%arg0: i32) -> (i32, i32) {
    %c0_i32 = arith.constant 0 : i32
    %c0_i32_0 = arith.constant 0 : i32
    return %arg0, %c0_i32 : i32, i32
  }
  func.func @transform_1(%arg0: i32) -> (i32, i32) {
    %c0_i32 = arith.constant 0 : i32
    %c0_i32_0 = arith.constant 0 : i32
    %c0_i32_1 = arith.constant 0 : i32
    return %c0_i32, %c0_i32_0 : i32, i32
  }
  func.func @transform_2(%arg0: i32) -> (i32, i32) {
    %c0_i32 = arith.constant 0 : i32
    %c0_i32_0 = arith.constant 0 : i32
    %c0_i32_1 = arith.constant 0 : i32
    return %c0_i32, %c0_i32_0 : i32, i32
  }
  func.func @transform_3(%arg0: i32) -> (i32, i32) {
    %c0_i32 = arith.constant 0 : i32
    %c0_i32_0 = arith.constant 0 : i32
    %c0_i32_1 = arith.constant 0 : i32
    return %c0_i32, %c0_i32_0 : i32, i32
  }
  func.func @transform_4(%arg0: i32) -> (i32, i32) {
    %c0_i32 = arith.constant 0 : i32
    %c0_i32_0 = arith.constant 0 : i32
    %c0_i32_1 = arith.constant 0 : i32
    return %c0_i32, %c0_i32_0 : i32, i32
  }
  func.func @transform_5(%arg0: i32) -> (i32, i32) {
    %c0_i32 = arith.constant 0 : i32
    %c0_i32_0 = arith.constant 0 : i32
    return %c0_i32, %arg0 : i32, i32
  }
}

module attributes {stable_mosaic.version = 11 : i64} {
  func.func @pe_head_kernel(%arg0: i32, %arg1: memref<128x32xf32, #tpu.memory_space<vmem>>, %arg2: memref<32x128xf32, #tpu.memory_space<vmem>>, %arg3: memref<1x128xf32, #tpu.memory_space<vmem>>, %arg4: memref<8x128xf32, #tpu.memory_space<vmem>>, %arg5: memref<8x1xf32, #tpu.memory_space<vmem>>, %arg6: memref<8x128xf32, #tpu.memory_space<vmem>>) attributes {dimension_semantics = [#tpu.dimension_semantics<parallel>], iteration_bounds = array<i64: 1>, scalar_prefetch = 0 : i64, scratch_operands = 0 : i64, tpu.core_type = #tpu.core_type<tc>, window_params = [{transform_indices = @transform_0, window_bounds = array<i64: 128, 32>}, {pipeline_mode = #tpu.pipeline_mode<synchronous>, transform_indices = @transform_1, window_bounds = array<i64: 32, 128>}, {pipeline_mode = #tpu.pipeline_mode<synchronous>, transform_indices = @transform_2, window_bounds = array<i64: 1, 128>}, {pipeline_mode = #tpu.pipeline_mode<synchronous>, transform_indices = @transform_3, window_bounds = array<i64: 8, 128>}, {pipeline_mode = #tpu.pipeline_mode<synchronous>, transform_indices = @transform_4, window_bounds = array<i64: 8, 1>}, {transform_indices = @transform_5, window_bounds = array<i64: 8, 128>}]} {
    %c0 = arith.constant 0 : index
    %c0_0 = arith.constant 0 : index
    %0 = vector.load %arg1[%c0, %c0_0] : memref<128x32xf32, #tpu.memory_space<vmem>>, vector<128x32xf32>
    %c0_1 = arith.constant 0 : index
    %c0_2 = arith.constant 0 : index
    %1 = vector.load %arg2[%c0_1, %c0_2] : memref<32x128xf32, #tpu.memory_space<vmem>>, vector<32x128xf32>
    %cst = arith.constant dense<0.000000e+00> : vector<128x128xf32>
    %2 = tpu.matmul %0, %1, %cst {dimension_numbers = #tpu.dot_dimension_numbers<[1], [0], [0], [1], [0, 0, 1, 1], [], []>} : vector<128x32xf32>, vector<32x128xf32>, vector<128x128xf32> -> vector<128x128xf32>
    %c0_3 = arith.constant 0 : index
    %c0_4 = arith.constant 0 : index
    %3 = vector.load %arg3[%c0_3, %c0_4] : memref<1x128xf32, #tpu.memory_space<vmem>>, vector<1x128xf32>
    %4 = vector.broadcast %3 : vector<1x128xf32> to vector<128x128xf32>
    %5 = arith.addf %2, %4 : vector<128x128xf32>
    %cst_5 = arith.constant 0.000000e+00 : f32
    %6 = vector.broadcast %cst_5 : f32 to vector<128x128xf32>
    %7 = arith.maximumf %5, %6 : vector<128x128xf32>
    %c0_6 = arith.constant 0 : index
    %c0_7 = arith.constant 0 : index
    %8 = vector.load %arg4[%c0_6, %c0_7] : memref<8x128xf32, #tpu.memory_space<vmem>>, vector<8x128xf32>
    %cst_8 = arith.constant dense<0.000000e+00> : vector<8x128xf32>
    %9 = tpu.matmul %8, %7, %cst_8 {dimension_numbers = #tpu.dot_dimension_numbers<[1], [1], [0], [0], [0, 0, 1, 0], [], []>} : vector<8x128xf32>, vector<128x128xf32>, vector<8x128xf32> -> vector<8x128xf32>
    %c0_9 = arith.constant 0 : index
    %c0_10 = arith.constant 0 : index
    %10 = vector.load %arg5[%c0_9, %c0_10] : memref<8x1xf32, #tpu.memory_space<vmem>>, vector<8x1xf32>
    %11 = vector.broadcast %10 : vector<8x1xf32> to vector<8x128xf32>
    %12 = arith.addf %9, %11 : vector<8x128xf32>
    %c0_11 = arith.constant 0 : index
    %c0_12 = arith.constant 0 : index
    %13 = vector.load %arg6[%c0_11, %c0_12] : memref<8x128xf32, #tpu.memory_space<vmem>>, vector<8x128xf32>
    tpu.vector_store %arg6[%c0_11, %c0_12], %12 {strides = array<i32>} : memref<8x128xf32, #tpu.memory_space<vmem>>, vector<8x128xf32>,
    return
  }
  func.func @transform_0(%arg0: i32) -> (i32, i32) {
    %c0_i32 = arith.constant 0 : i32
    %c0_i32_0 = arith.constant 0 : i32
    return %arg0, %c0_i32 : i32, i32
  }
  func.func @transform_1(%arg0: i32) -> (i32, i32) {
    %c0_i32 = arith.constant 0 : i32
    %c0_i32_0 = arith.constant 0 : i32
    %c0_i32_1 = arith.constant 0 : i32
    return %c0_i32, %c0_i32_0 : i32, i32
  }
  func.func @transform_2(%arg0: i32) -> (i32, i32) {
    %c0_i32 = arith.constant 0 : i32
    %c0_i32_0 = arith.constant 0 : i32
    %c0_i32_1 = arith.constant 0 : i32
    return %c0_i32, %c0_i32_0 : i32, i32
  }
  func.func @transform_3(%arg0: i32) -> (i32, i32) {
    %c0_i32 = arith.constant 0 : i32
    %c0_i32_0 = arith.constant 0 : i32
    %c0_i32_1 = arith.constant 0 : i32
    return %c0_i32, %c0_i32_0 : i32, i32
  }
  func.func @transform_4(%arg0: i32) -> (i32, i32) {
    %c0_i32 = arith.constant 0 : i32
    %c0_i32_0 = arith.constant 0 : i32
    %c0_i32_1 = arith.constant 0 : i32
    return %c0_i32, %c0_i32_0 : i32, i32
  }
  func.func @transform_5(%arg0: i32) -> (i32, i32) {
    %c0_i32 = arith.constant 0 : i32
    %c0_i32_0 = arith.constant 0 : i32
    return %c0_i32, %arg0 : i32, i32
  }
}

</mosaic_0001>

<llo_original>
// kernel: tpu_custom_call.1
$region0: #{tpu_custom_call.1}
  #allocation0 [shape = 'u32[]', space=smem, size = 0x4, offset = 0x4, fixed_abs, tag = 'smem constant byte address 0x4 - core index']
  #allocation1 [shape = 'u32[144,128]{1,0:T(1,128)}', space=vmem, size = 0x12000, scoped, tag = 'internal scratch']
  %s0 = inlined_call_operand.vmem [shape: f32[128,32], index: 0, kind: input, shape index: {}]
  %s1 = inlined_call_operand.vmem [shape: f32[32,128], index: 1, kind: input, shape index: {}]
  %s2 = inlined_call_operand.vmem [shape: f32[1,128], index: 2, kind: input, shape index: {}]
  %s3 = inlined_call_operand.vmem [shape: f32[8,128], index: 3, kind: input, shape index: {}]
  %s4 = inlined_call_operand.vmem [shape: f32[8,1], index: 4, kind: input, shape index: {}]
  %s5 = inlined_call_operand.hbm [shape: f32[8,128], index: 5, kind: output, shape index: {}]
  %s6 = sld [smem:[#allocation0]]
  $region30: #{tpu_custom_call.1} parent=0
    _
  %s8 = ssub.s32 1, %s6
  %s9 = scalar_select 0, %s8, %s6
  $region1: #{tpu_custom_call.1} parent=0
    #allocation2 [shape = 'u8[4096]{0}', space=vmem, size = 0x1000, scoped, tag = 'output window, operand 0, single buffered']
    #allocation3 [shape = 's32[1]{0}', space=sflag, size = 0x4, scoped, tag = 'scoped memory for tpu_custom_call.1']
    %10 = vsyncpa [#allocation3], 0
    // Predicated region
    $region2: #{tpu_custom_call.1} parent=1 // pred_check
      _
    $region3: #{tpu_custom_call.1} parent=1 // pred_check_branch
      %12 = sbr.rel (0) target = $region5
    $region4: #{tpu_custom_call.1} parent=1 // pred_region
      _
    $region5: #{tpu_custom_call.1} parent=1 // pred_fallthru
      _
    // Predicated region
    $region6: #{tpu_custom_call.1} parent=1 // pred_check
      _
    $region7: #{tpu_custom_call.1} parent=1 // pred_check_branch
      %14 = sbr.rel (0) target = $region9
    $region8: #{tpu_custom_call.1} parent=1 // pred_region
      _
    $region9: #{tpu_custom_call.1} parent=1 // pred_fallthru
      _
    // Predicated region
    $region10: #{tpu_custom_call.1} parent=1 // pred_check
      _
    $region11: #{tpu_custom_call.1} parent=1 // pred_check_branch
      %16 = sbr.rel (0) target = $region13
    $region12: #{tpu_custom_call.1} parent=1 // pred_region
      _
    $region13: #{tpu_custom_call.1} parent=1 // pred_fallthru
      _
    // Predicated region
    $region14: #{tpu_custom_call.1} parent=1 // pred_check
      _
    $region15: #{tpu_custom_call.1} parent=1 // pred_check_branch
      %18 = sbr.rel (0) target = $region17
    $region16: #{tpu_custom_call.1} parent=1 // pred_region
      _
    $region17: #{tpu_custom_call.1} parent=1 // pred_fallthru
      _
    // Predicated region
    $region18: #{tpu_custom_call.1} parent=1 // pred_check
      _
    $region19: #{tpu_custom_call.1} parent=1 // pred_check_branch
      %20 = sbr.rel (0) target = $region21
    $region20: #{tpu_custom_call.1} parent=1 // pred_region
      _
    $region21: #{tpu_custom_call.1} parent=1 // pred_fallthru
      _
    %v21 = vld [vmem:[%s0] sm:$0xff]
    %v22 = vld [vmem:[%s0 + $0x8] sm:$0xff]
    %v23 = vld [vmem:[%s0 + $0x10] sm:$0xff]
    %v24 = vld [vmem:[%s0 + $0x18] sm:$0xff]
    %v25 = vld [vmem:[%s0 + $0x20] sm:$0xff]
    %v26 = vld [vmem:[%s0 + $0x28] sm:$0xff]
    %v27 = vld [vmem:[%s0 + $0x30] sm:$0xff]
    %v28 = vld [vmem:[%s0 + $0x38] sm:$0xff]
    %v29 = vld [vmem:[%s0 + $0x40] sm:$0xff]
    %v30 = vld [vmem:[%s0 + $0x48] sm:$0xff]
    %v31 = vld [vmem:[%s0 + $0x50] sm:$0xff]
    %v32 = vld [vmem:[%s0 + $0x58] sm:$0xff]
    %v33 = vld [vmem:[%s0 + $0x60] sm:$0xff]
    %v34 = vld [vmem:[%s0 + $0x68] sm:$0xff]
    %v35 = vld [vmem:[%s0 + $0x70] sm:$0xff]
    %v36 = vld [vmem:[%s0 + $0x78] sm:$0xff]
    %v37 = vld [vmem:[%s1] sm:$0xff]
    %v38 = vld [vmem:[%s1 + $0x8] sm:$0xff]
    %v39 = vld [vmem:[%s1 + $0x10] sm:$0xff]
    %v40 = vld [vmem:[%s1 + $0x18] sm:$0xff]
    %v41 = vld [vmem:[%s2] sm:$0x1]
    %v43 = vlaneseq
    %v44 = vshrl.u32 %v43, 7
    %v45 = vsub.s32 0, %v44
    %v46 = vrot.slane %v41, %v45
    %vm48 = vcmask 261120
    %v50 = vsel %vm48, %v21, 0
    %v53 = vsel %vm48, %v22, 0
    %v56 = vsel %vm48, %v23, 0
    %v59 = vsel %vm48, %v24, 0
    %v62 = vsel %vm48, %v25, 0
    %v65 = vsel %vm48, %v26, 0
    %v68 = vsel %vm48, %v27, 0
    %v71 = vsel %vm48, %v28, 0
    %v74 = vsel %vm48, %v29, 0
    %v77 = vsel %vm48, %v30, 0
    %v80 = vsel %vm48, %v31, 0
    %v83 = vsel %vm48, %v32, 0
    %v86 = vsel %vm48, %v33, 0
    %v89 = vsel %vm48, %v34, 0
    %v92 = vsel %vm48, %v35, 0
    %v95 = vsel %vm48, %v36, 0
    %97 = vmatprep.subr.mxu0 0.0
    %98 = vmatpush1.msra.mxu0 %v37
    %99 = vmatprep.subr.mxu0 0.0
    %100 = vmatpush1.msra.mxu0 %v38
    %101 = vmatprep.subr.mxu0 0.0
    %102 = vmatpush1.msra.mxu0 %v39
    %103 = vmatprep.subr.mxu0 0.0
    %104 = vmatpush1.msra.mxu0 %v40
    %105 = vmatprep.subr.mxu0 0.0
    %106 = vmatpush1.msra.mxu0 0.0
    %107 = vmatprep.subr.mxu0 0.0
    %108 = vmatpush1.msra.mxu0 0.0
    %109 = vmatprep.subr.mxu0 0.0
    %110 = vmatpush1.msra.mxu0 0.0
    %111 = vmatprep.subr.mxu0 0.0
    %112 = vmatpush1.msra.mxu0 0.0
    %113 = vmatprep.subr.mxu0 0.0
    %114 = vmatpush1.msra.mxu0 0.0
    %115 = vmatprep.subr.mxu0 0.0
    %116 = vmatpush1.msra.mxu0 0.0
    %117 = vmatprep.subr.mxu0 0.0
    %118 = vmatpush1.msra.mxu0 0.0
    %119 = vmatprep.subr.mxu0 0.0
    %120 = vmatpush1.msra.mxu0 0.0
    %121 = vmatprep.subr.mxu0 0.0
    %122 = vmatpush1.msra.mxu0 0.0
    %123 = vmatprep.subr.mxu0 0.0
    %124 = vmatpush1.msra.mxu0 0.0
    %125 = vmatprep.subr.mxu0 0.0
    %126 = vmatpush1.msra.mxu0 0.0
    %127 = vmatprep.subr.mxu0 0.0
    %128 = vmatpush1.msra.mxu0 0.0
    %129 = vmatprep.subr.mxu0 0.0
    %130 = vmatpush1.msra.mxu0 0.0
    %131 = vmatprep.subr.mxu0 0.0
    %132 = vmatpush1.msra.mxu0 0.0
    %133 = vmatprep.subr.mxu0 0.0
    %134 = vmatpush1.msra.mxu0 0.0
    %135 = vmatprep.subr.mxu0 0.0
    %136 = vmatpush1.msra.mxu0 0.0
    %137 = vmatprep.subr.mxu0 0.0
    %138 = vmatpush1.msra.mxu0 0.0
    %139 = vmatprep.subr.mxu0 0.0
    %140 = vmatpush1.msra.mxu0 0.0
    %141 = vmatprep.subr.mxu0 0.0
    %142 = vmatpush1.msra.mxu0 0.0
    %143 = vmatprep.subr.mxu0 0.0
    %144 = vmatpush1.msra.mxu0 0.0
    %145 = vmatprep.subr.mxu0 0.0
    %146 = vmatpush1.msra.mxu0 0.0
    %147 = vmatprep.subr.mxu0 0.0
    %148 = vmatpush1.msra.mxu0 0.0
    %149 = vmatprep.subr.mxu0 0.0
    %150 = vmatpush1.msra.mxu0 0.0
    %151 = vmatprep.subr.mxu0 0.0
    %152 = vmatpush1.msra.mxu0 0.0
    %153 = vmatprep.subr.mxu0 0.0
    %154 = vmatpush1.msra.mxu0 0.0
    %155 = vmatprep.subr.mxu0 0.0
    %156 = vmatpush1.msra.mxu0 0.0
    %157 = vmatprep.subr.mxu0 0.0
    %158 = vmatpush1.msra.mxu0 0.0
    %159 = vmatprep.subr.mxu0 0.0
    %160 = vmatpush1.msra.mxu0 0.0
    %161 = vmatprep.mubr.f32.mxu0 0.0
    %162 = vmatmul.mubr.f32.gmra.mrb[0].mxu0 %v50
    %v163 = vpop.f32.mrb[0].mxu0
    %v164 = vadd.f32 %v46, %v163
    %v165 = vpop.f32.mrb[0].mxu0
    %166 = vmatprep.mubr.f32.mxu0 0.0
    %167 = vmatmul.mubr.f32.gmra.mrb[0].mxu0 %v53
    %v168 = vpop.f32.mrb[0].mxu0
    %v169 = vadd.f32 %v46, %v168
    %v170 = vpop.f32.mrb[0].mxu0
    %171 = vmatprep.mubr.f32.mxu0 0.0
    %172 = vmatmul.mubr.f32.gmra.mrb[0].mxu0 %v56
    %v173 = vpop.f32.mrb[0].mxu0
    %v174 = vadd.f32 %v46, %v173
    %v175 = vpop.f32.mrb[0].mxu0
    %176 = vmatprep.mubr.f32.mxu0 0.0
    %177 = vmatmul.mubr.f32.gmra.mrb[0].mxu0 %v59
    %v178 = vpop.f32.mrb[0].mxu0
    %v179 = vadd.f32 %v46, %v178
    %v180 = vpop.f32.mrb[0].mxu0
    %181 = vmatprep.mubr.f32.mxu0 0.0
    %182 = vmatmul.mubr.f32.gmra.mrb[0].mxu0 %v62
    %v183 = vpop.f32.mrb[0].mxu0
    %v184 = vadd.f32 %v46, %v183
    %v185 = vpop.f32.mrb[0].mxu0
    %186 = vmatprep.mubr.f32.mxu0 0.0
    %187 = vmatmul.mubr.f32.gmra.mrb[0].mxu0 %v65
    %v188 = vpop.f32.mrb[0].mxu0
    %v189 = vadd.f32 %v46, %v188
    %v190 = vpop.f32.mrb[0].mxu0
    %191 = vmatprep.mubr.f32.mxu0 0.0
    %192 = vmatmul.mubr.f32.gmra.mrb[0].mxu0 %v68
    %v193 = vpop.f32.mrb[0].mxu0
    %v194 = vadd.f32 %v46, %v193
    %v195 = vpop.f32.mrb[0].mxu0
    %196 = vmatprep.mubr.f32.mxu0 0.0
    %197 = vmatmul.mubr.f32.gmra.mrb[0].mxu0 %v71
    %v198 = vpop.f32.mrb[0].mxu0
    %v199 = vadd.f32 %v46, %v198
    %v200 = vpop.f32.mrb[0].mxu0
    %201 = vmatprep.mubr.f32.mxu0 0.0
    %202 = vmatmul.mubr.f32.gmra.mrb[0].mxu0 %v74
    %v203 = vpop.f32.mrb[0].mxu0
    %v204 = vadd.f32 %v46, %v203
    %v205 = vpop.f32.mrb[0].mxu0
    %206 = vmatprep.mubr.f32.mxu0 0.0
    %207 = vmatmul.mubr.f32.gmra.mrb[0].mxu0 %v77
    %v208 = vpop.f32.mrb[0].mxu0
    %v209 = vadd.f32 %v46, %v208
    %v210 = vpop.f32.mrb[0].mxu0
    %211 = vmatprep.mubr.f32.mxu0 0.0
    %212 = vmatmul.mubr.f32.gmra.mrb[0].mxu0 %v80
    %v213 = vpop.f32.mrb[0].mxu0
    %v214 = vadd.f32 %v46, %v213
    %v215 = vpop.f32.mrb[0].mxu0
    %216 = vmatprep.mubr.f32.mxu0 0.0
    %217 = vmatmul.mubr.f32.gmra.mrb[0].mxu0 %v83
    %v218 = vpop.f32.mrb[0].mxu0
    %v219 = vadd.f32 %v46, %v218
    %v220 = vpop.f32.mrb[0].mxu0
    %221 = vmatprep.mubr.f32.mxu0 0.0
    %222 = vmatmul.mubr.f32.gmra.mrb[0].mxu0 %v86
    %v223 = vpop.f32.mrb[0].mxu0
    %v224 = vadd.f32 %v46, %v223
    %v225 = vpop.f32.mrb[0].mxu0
    %226 = vmatprep.mubr.f32.mxu0 0.0
    %227 = vmatmul.mubr.f32.gmra.mrb[0].mxu0 %v89
    %v228 = vpop.f32.mrb[0].mxu0
    %v229 = vadd.f32 %v46, %v228
    %v230 = vpop.f32.mrb[0].mxu0
    %231 = vmatprep.mubr.f32.mxu0 0.0
    %232 = vmatmul.mubr.f32.gmra.mrb[0].mxu0 %v92
    %v233 = vpop.f32.mrb[0].mxu0
    %v234 = vadd.f32 %v46, %v233
    %v235 = vpop.f32.mrb[0].mxu0
    %236 = vmatprep.mubr.f32.mxu0 0.0
    %237 = vmatmul.mubr.f32.gmra.mrb[0].mxu0 %v95
    %v238 = vpop.f32.mrb[0].mxu0
    %v239 = vadd.f32 %v46, %v238
    %v240 = vpop.f32.mrb[0].mxu0
    %241 = vdwg.mxu0
    %v242 = vmax.f32 %v164, 0.0
    %v243 = vmax.f32 %v169, 0.0
    %v244 = vmax.f32 %v174, 0.0
    %v245 = vmax.f32 %v179, 0.0
    %v246 = vmax.f32 %v184, 0.0
    %v247 = vmax.f32 %v189, 0.0
    %v248 = vmax.f32 %v194, 0.0
    %v249 = vmax.f32 %v199, 0.0
    %v250 = vmax.f32 %v204, 0.0
    %v251 = vmax.f32 %v209, 0.0
    %v252 = vmax.f32 %v214, 0.0
    %v253 = vmax.f32 %v219, 0.0
    %v254 = vmax.f32 %v224, 0.0
    %v255 = vmax.f32 %v229, 0.0
    %v256 = vmax.f32 %v234, 0.0
    %v257 = vmax.f32 %v239, 0.0
    %v258 = vld [vmem:[%s3] sm:$0xff]
    %v259 = vld [vmem:[%s4] sm:$0xff]
    %261 = vset.pattern.permute.xlu0 0
    %262 = vperm.xlu0 %261, %v259
    %v263 = vpop.permute.xlu0 %262
    %265 = vmatprep.subr.mxu0 0.0
    %266 = vmatpush1.xpose.msra.mxu0 %v242
    %267 = vmatprep.subr.mxu0 0.0
    %268 = vmatpush1.xpose.msra.mxu0 %v243
    %269 = vmatprep.subr.mxu0 0.0
    %270 = vmatpush1.xpose.msra.mxu0 %v244
    %271 = vmatprep.subr.mxu0 0.0
    %272 = vmatpush1.xpose.msra.mxu0 %v245
    %273 = vmatprep.subr.mxu0 0.0
    %274 = vmatpush1.xpose.msra.mxu0 %v246
    %275 = vmatprep.subr.mxu0 0.0
    %276 = vmatpush1.xpose.msra.mxu0 %v247
    %277 = vmatprep.subr.mxu0 0.0
    %278 = vmatpush1.xpose.msra.mxu0 %v248
    %279 = vmatprep.subr.mxu0 0.0
    %280 = vmatpush1.xpose.msra.mxu0 %v249
    %281 = vmatprep.subr.mxu0 0.0
    %282 = vmatpush1.xpose.msra.mxu0 %v250
    %283 = vmatprep.subr.mxu0 0.0
    %284 = vmatpush1.xpose.msra.mxu0 %v251
    %285 = vmatprep.subr.mxu0 0.0
    %286 = vmatpush1.xpose.msra.mxu0 %v252
    %287 = vmatprep.subr.mxu0 0.0
    %288 = vmatpush1.xpose.msra.mxu0 %v253
    %289 = vmatprep.subr.mxu0 0.0
    %290 = vmatpush1.xpose.msra.mxu0 %v254
    %291 = vmatprep.subr.mxu0 0.0
    %292 = vmatpush1.xpose.msra.mxu0 %v255
    %293 = vmatprep.subr.mxu0 0.0
    %294 = vmatpush1.xpose.msra.mxu0 %v256
    %295 = vmatprep.subr.mxu0 0.0
    %296 = vmatpush1.xpose.msra.mxu0 %v257
    %297 = vmatprep.subr.mxu0 0.0
    %298 = vmatpush1.xpose.msra.mxu0 0.0
    %299 = vmatprep.subr.mxu0 0.0
    %300 = vmatpush1.xpose.msra.mxu0 0.0
    %301 = vmatprep.subr.mxu0 0.0
    %302 = vmatpush1.xpose.msra.mxu0 0.0
    %303 = vmatprep.subr.mxu0 0.0
    %304 = vmatpush1.xpose.msra.mxu0 0.0
    %305 = vmatprep.subr.mxu0 0.0
    %306 = vmatpush1.xpose.msra.mxu0 0.0
    %307 = vmatprep.subr.mxu0 0.0
    %308 = vmatpush1.xpose.msra.mxu0 0.0
    %309 = vmatprep.subr.mxu0 0.0
    %310 = vmatpush1.xpose.msra.mxu0 0.0
    %311 = vmatprep.subr.mxu0 0.0
    %312 = vmatpush1.xpose.msra.mxu0 0.0
    %313 = vmatprep.subr.mxu0 0.0
    %314 = vmatpush1.xpose.msra.mxu0 0.0
    %315 = vmatprep.subr.mxu0 0.0
    %316 = vmatpush1.xpose.msra.mxu0 0.0
    %317 = vmatprep.subr.mxu0 0.0
    %318 = vmatpush1.xpose.msra.mxu0 0.0
    %319 = vmatprep.subr.mxu0 0.0
    %320 = vmatpush1.xpose.msra.mxu0 0.0
    %321 = vmatprep.subr.mxu0 0.0
    %322 = vmatpush1.xpose.msra.mxu0 0.0
    %323 = vmatprep.subr.mxu0 0.0
    %324 = vmatpush1.xpose.msra.mxu0 0.0
    %325 = vmatprep.subr.mxu0 0.0
    %326 = vmatpush1.xpose.msra.mxu0 0.0
    %327 = vmatprep.subr.mxu0 0.0
    %328 = vmatpush1.xpose.msra.mxu0 0.0
    %329 = vmatprep.mubr.f32.mxu0 0.0
    %330 = vmatmul.mubr.f32.gmra.mrb[0].mxu0 %v258
    %v331 = vpop.f32.mrb[0].mxu0
    %v332 = vadd.f32 %v263, %v331
    %v333 = vpop.f32.mrb[0].mxu0
    %334 = vdwg.mxu0
    %335 = vst [vmem:[#allocation2] sm:$0xff] %v332
    // Predicated region
    $region22: #{tpu_custom_call.1} parent=1 // pred_check
      _
    $region23: #{tpu_custom_call.1} parent=1 // pred_check_branch
      %337 = sbr.rel (0) target = $region25
    $region24: #{tpu_custom_call.1} parent=1 // pred_region
      %s339 = ssub.s32 128, 128
      %340 = vsyncadd [#allocation3], %s339
      %s342 = sshll.u32 [#allocation2], 4
      %s343 = int_to_ptr.vmem [resolvable:$true] %s342
      %345 = dma.vmem_to_hbm [thread:$0]  %s343, 128, %s5, [#allocation3]
    $region25: #{tpu_custom_call.1} parent=1 // pred_fallthru
      _
    // Predicated region
    $region26: #{tpu_custom_call.1} parent=1 // pred_check
      _
    $region27: #{tpu_custom_call.1} parent=1 // pred_check_branch
      %347 = sbr.rel (0) target = $region29
    $region28: #{tpu_custom_call.1} parent=1 // pred_region
      %348 = dma.done [#allocation3], 128
    $region29: #{tpu_custom_call.1} parent=1 // pred_fallthru
      _
    %349 = vsyncpa [#allocation3], 1

// kernel: tpu_custom_call.1
$region0: #{tpu_custom_call.1}
  #allocation0 [shape = 'u32[]', space=smem, size = 0x4, offset = 0x4, fixed_abs, tag = 'smem constant byte address 0x4 - core index']
  #allocation1 [shape = 'u32[144,128]{1,0:T(1,128)}', space=vmem, size = 0x12000, scoped, tag = 'internal scratch']
  %s0 = inlined_call_operand.vmem [shape: f32[128,32], index: 0, kind: input, shape index: {}]
  %s1 = inlined_call_operand.vmem [shape: f32[32,128], index: 1, kind: input, shape index: {}]
  %s2 = inlined_call_operand.vmem [shape: f32[1,128], index: 2, kind: input, shape index: {}]
  %s3 = inlined_call_operand.vmem [shape: f32[8,128], index: 3, kind: input, shape index: {}]
  %s4 = inlined_call_operand.vmem [shape: f32[8,1], index: 4, kind: input, shape index: {}]
  %s5 = inlined_call_operand.hbm [shape: f32[8,128], index: 5, kind: output, shape index: {}]
  %s6 = sld [smem:[#allocation0]]
  $region30: #{tpu_custom_call.1} parent=0
    _
  %s8 = ssub.s32 1, %s6
  %s9 = scalar_select 0, %s8, %s6
  $region1: #{tpu_custom_call.1} parent=0
    #allocation2 [shape = 'u8[4096]{0}', space=vmem, size = 0x1000, scoped, tag = 'output window, operand 0, single buffered']
    #allocation3 [shape = 's32[1]{0}', space=sflag, size = 0x4, scoped, tag = 'scoped memory for tpu_custom_call.1']
    %10 = vsyncpa [#allocation3], 0
    // Predicated region
    $region2: #{tpu_custom_call.1} parent=1 // pred_check
      _
    $region3: #{tpu_custom_call.1} parent=1 // pred_check_branch
      %12 = sbr.rel (0) target = $region5
    $region4: #{tpu_custom_call.1} parent=1 // pred_region
      _
    $region5: #{tpu_custom_call.1} parent=1 // pred_fallthru
      _
    // Predicated region
    $region6: #{tpu_custom_call.1} parent=1 // pred_check
      _
    $region7: #{tpu_custom_call.1} parent=1 // pred_check_branch
      %14 = sbr.rel (0) target = $region9
    $region8: #{tpu_custom_call.1} parent=1 // pred_region
      _
    $region9: #{tpu_custom_call.1} parent=1 // pred_fallthru
      _
    // Predicated region
    $region10: #{tpu_custom_call.1} parent=1 // pred_check
      _
    $region11: #{tpu_custom_call.1} parent=1 // pred_check_branch
      %16 = sbr.rel (0) target = $region13
    $region12: #{tpu_custom_call.1} parent=1 // pred_region
      _
    $region13: #{tpu_custom_call.1} parent=1 // pred_fallthru
      _
    // Predicated region
    $region14: #{tpu_custom_call.1} parent=1 // pred_check
      _
    $region15: #{tpu_custom_call.1} parent=1 // pred_check_branch
      %18 = sbr.rel (0) target = $region17
    $region16: #{tpu_custom_call.1} parent=1 // pred_region
      _
    $region17: #{tpu_custom_call.1} parent=1 // pred_fallthru
      _
    // Predicated region
    $region18: #{tpu_custom_call.1} parent=1 // pred_check
      _
    $region19: #{tpu_custom_call.1} parent=1 // pred_check_branch
      %20 = sbr.rel (0) target = $region21
    $region20: #{tpu_custom_call.1} parent=1 // pred_region
      _
    $region21: #{tpu_custom_call.1} parent=1 // pred_fallthru
      _
    %v21 = vld [vmem:[%s0] sm:$0xff]
    %v22 = vld [vmem:[%s0 + $0x8] sm:$0xff]
    %v23 = vld [vmem:[%s0 + $0x10] sm:$0xff]
    %v24 = vld [vmem:[%s0 + $0x18] sm:$0xff]
    %v25 = vld [vmem:[%s0 + $0x20] sm:$0xff]
    %v26 = vld [vmem:[%s0 + $0x28] sm:$0xff]
    %v27 = vld [vmem:[%s0 + $0x30] sm:$0xff]
    %v28 = vld [vmem:[%s0 + $0x38] sm:$0xff]
    %v29 = vld [vmem:[%s0 + $0x40] sm:$0xff]
    %v30 = vld [vmem:[%s0 + $0x48] sm:$0xff]
    %v31 = vld [vmem:[%s0 + $0x50] sm:$0xff]
    %v32 = vld [vmem:[%s0 + $0x58] sm:$0xff]
    %v33 = vld [vmem:[%s0 + $0x60] sm:$0xff]
    %v34 = vld [vmem:[%s0 + $0x68] sm:$0xff]
    %v35 = vld [vmem:[%s0 + $0x70] sm:$0xff]
    %v36 = vld [vmem:[%s0 + $0x78] sm:$0xff]
    %v37 = vld [vmem:[%s1] sm:$0xff]
    %v38 = vld [vmem:[%s1 + $0x8] sm:$0xff]
    %v39 = vld [vmem:[%s1 + $0x10] sm:$0xff]
    %v40 = vld [vmem:[%s1 + $0x18] sm:$0xff]
    %v41 = vld [vmem:[%s2] sm:$0x1]
    %v43 = vlaneseq
    %v44 = vshrl.u32 %v43, 7
    %v45 = vsub.s32 0, %v44
    %v46 = vrot.slane %v41, %v45
    %vm48 = vcmask 261120
    %v50 = vsel %vm48, %v21, 0
    %v53 = vsel %vm48, %v22, 0
    %v56 = vsel %vm48, %v23, 0
    %v59 = vsel %vm48, %v24, 0
    %v62 = vsel %vm48, %v25, 0
    %v65 = vsel %vm48, %v26, 0
    %v68 = vsel %vm48, %v27, 0
    %v71 = vsel %vm48, %v28, 0
    %v74 = vsel %vm48, %v29, 0
    %v77 = vsel %vm48, %v30, 0
    %v80 = vsel %vm48, %v31, 0
    %v83 = vsel %vm48, %v32, 0
    %v86 = vsel %vm48, %v33, 0
    %v89 = vsel %vm48, %v34, 0
    %v92 = vsel %vm48, %v35, 0
    %v95 = vsel %vm48, %v36, 0
    %97 = vmatprep.subr.mxu0 0.0
    %98 = vmatpush1.msra.mxu0 %v37
    %99 = vmatprep.subr.mxu0 0.0
    %100 = vmatpush1.msra.mxu0 %v38
    %101 = vmatprep.subr.mxu0 0.0
    %102 = vmatpush1.msra.mxu0 %v39
    %103 = vmatprep.subr.mxu0 0.0
    %104 = vmatpush1.msra.mxu0 %v40
    %105 = vmatprep.subr.mxu0 0.0
    %106 = vmatpush1.msra.mxu0 0.0
    %107 = vmatprep.subr.mxu0 0.0
    %108 = vmatpush1.msra.mxu0 0.0
    %109 = vmatprep.subr.mxu0 0.0
    %110 = vmatpush1.msra.mxu0 0.0
    %111 = vmatprep.subr.mxu0 0.0
    %112 = vmatpush1.msra.mxu0 0.0
    %113 = vmatprep.subr.mxu0 0.0
    %114 = vmatpush1.msra.mxu0 0.0
    %115 = vmatprep.subr.mxu0 0.0
    %116 = vmatpush1.msra.mxu0 0.0
    %117 = vmatprep.subr.mxu0 0.0
    %118 = vmatpush1.msra.mxu0 0.0
    %119 = vmatprep.subr.mxu0 0.0
    %120 = vmatpush1.msra.mxu0 0.0
    %121 = vmatprep.subr.mxu0 0.0
    %122 = vmatpush1.msra.mxu0 0.0
    %123 = vmatprep.subr.mxu0 0.0
    %124 = vmatpush1.msra.mxu0 0.0
    %125 = vmatprep.subr.mxu0 0.0
    %126 = vmatpush1.msra.mxu0 0.0
    %127 = vmatprep.subr.mxu0 0.0
    %128 = vmatpush1.msra.mxu0 0.0
    %129 = vmatprep.subr.mxu0 0.0
    %130 = vmatpush1.msra.mxu0 0.0
    %131 = vmatprep.subr.mxu0 0.0
    %132 = vmatpush1.msra.mxu0 0.0
    %133 = vmatprep.subr.mxu0 0.0
    %134 = vmatpush1.msra.mxu0 0.0
    %135 = vmatprep.subr.mxu0 0.0
    %136 = vmatpush1.msra.mxu0 0.0
    %137 = vmatprep.subr.mxu0 0.0
    %138 = vmatpush1.msra.mxu0 0.0
    %139 = vmatprep.subr.mxu0 0.0
    %140 = vmatpush1.msra.mxu0 0.0
    %141 = vmatprep.subr.mxu0 0.0
    %142 = vmatpush1.msra.mxu0 0.0
    %143 = vmatprep.subr.mxu0 0.0
    %144 = vmatpush1.msra.mxu0 0.0
    %145 = vmatprep.subr.mxu0 0.0
    %146 = vmatpush1.msra.mxu0 0.0
    %147 = vmatprep.subr.mxu0 0.0
    %148 = vmatpush1.msra.mxu0 0.0
    %149 = vmatprep.subr.mxu0 0.0
    %150 = vmatpush1.msra.mxu0 0.0
    %151 = vmatprep.subr.mxu0 0.0
    %152 = vmatpush1.msra.mxu0 0.0
    %153 = vmatprep.subr.mxu0 0.0
    %154 = vmatpush1.msra.mxu0 0.0
    %155 = vmatprep.subr.mxu0 0.0
    %156 = vmatpush1.msra.mxu0 0.0
    %157 = vmatprep.subr.mxu0 0.0
    %158 = vmatpush1.msra.mxu0 0.0
    %159 = vmatprep.subr.mxu0 0.0
    %160 = vmatpush1.msra.mxu0 0.0
    %161 = vmatprep.mubr.f32.mxu0 0.0
    %162 = vmatmul.mubr.f32.gmra.mrb[0].mxu0 %v50
    %v163 = vpop.f32.mrb[0].mxu0
    %v164 = vadd.f32 %v46, %v163
    %v165 = vpop.f32.mrb[0].mxu0
    %166 = vmatprep.mubr.f32.mxu0 0.0
    %167 = vmatmul.mubr.f32.gmra.mrb[0].mxu0 %v53
    %v168 = vpop.f32.mrb[0].mxu0
    %v169 = vadd.f32 %v46, %v168
    %v170 = vpop.f32.mrb[0].mxu0
    %171 = vmatprep.mubr.f32.mxu0 0.0
    %172 = vmatmul.mubr.f32.gmra.mrb[0].mxu0 %v56
    %v173 = vpop.f32.mrb[0].mxu0
    %v174 = vadd.f32 %v46, %v173
    %v175 = vpop.f32.mrb[0].mxu0
    %176 = vmatprep.mubr.f32.mxu0 0.0
    %177 = vmatmul.mubr.f32.gmra.mrb[0].mxu0 %v59
    %v178 = vpop.f32.mrb[0].mxu0
    %v179 = vadd.f32 %v46, %v178
    %v180 = vpop.f32.mrb[0].mxu0
    %181 = vmatprep.mubr.f32.mxu0 0.0
    %182 = vmatmul.mubr.f32.gmra.mrb[0].mxu0 %v62
    %v183 = vpop.f32.mrb[0].mxu0
    %v184 = vadd.f32 %v46, %v183
    %v185 = vpop.f32.mrb[0].mxu0
    %186 = vmatprep.mubr.f32.mxu0 0.0
    %187 = vmatmul.mubr.f32.gmra.mrb[0].mxu0 %v65
    %v188 = vpop.f32.mrb[0].mxu0
    %v189 = vadd.f32 %v46, %v188
    %v190 = vpop.f32.mrb[0].mxu0
    %191 = vmatprep.mubr.f32.mxu0 0.0
    %192 = vmatmul.mubr.f32.gmra.mrb[0].mxu0 %v68
    %v193 = vpop.f32.mrb[0].mxu0
    %v194 = vadd.f32 %v46, %v193
    %v195 = vpop.f32.mrb[0].mxu0
    %196 = vmatprep.mubr.f32.mxu0 0.0
    %197 = vmatmul.mubr.f32.gmra.mrb[0].mxu0 %v71
    %v198 = vpop.f32.mrb[0].mxu0
    %v199 = vadd.f32 %v46, %v198
    %v200 = vpop.f32.mrb[0].mxu0
    %201 = vmatprep.mubr.f32.mxu0 0.0
    %202 = vmatmul.mubr.f32.gmra.mrb[0].mxu0 %v74
    %v203 = vpop.f32.mrb[0].mxu0
    %v204 = vadd.f32 %v46, %v203
    %v205 = vpop.f32.mrb[0].mxu0
    %206 = vmatprep.mubr.f32.mxu0 0.0
    %207 = vmatmul.mubr.f32.gmra.mrb[0].mxu0 %v77
    %v208 = vpop.f32.mrb[0].mxu0
    %v209 = vadd.f32 %v46, %v208
    %v210 = vpop.f32.mrb[0].mxu0
    %211 = vmatprep.mubr.f32.mxu0 0.0
    %212 = vmatmul.mubr.f32.gmra.mrb[0].mxu0 %v80
    %v213 = vpop.f32.mrb[0].mxu0
    %v214 = vadd.f32 %v46, %v213
    %v215 = vpop.f32.mrb[0].mxu0
    %216 = vmatprep.mubr.f32.mxu0 0.0
    %217 = vmatmul.mubr.f32.gmra.mrb[0].mxu0 %v83
    %v218 = vpop.f32.mrb[0].mxu0
    %v219 = vadd.f32 %v46, %v218
    %v220 = vpop.f32.mrb[0].mxu0
    %221 = vmatprep.mubr.f32.mxu0 0.0
    %222 = vmatmul.mubr.f32.gmra.mrb[0].mxu0 %v86
    %v223 = vpop.f32.mrb[0].mxu0
    %v224 = vadd.f32 %v46, %v223
    %v225 = vpop.f32.mrb[0].mxu0
    %226 = vmatprep.mubr.f32.mxu0 0.0
    %227 = vmatmul.mubr.f32.gmra.mrb[0].mxu0 %v89
    %v228 = vpop.f32.mrb[0].mxu0
    %v229 = vadd.f32 %v46, %v228
    %v230 = vpop.f32.mrb[0].mxu0
    %231 = vmatprep.mubr.f32.mxu0 0.0
    %232 = vmatmul.mubr.f32.gmra.mrb[0].mxu0 %v92
    %v233 = vpop.f32.mrb[0].mxu0
    %v234 = vadd.f32 %v46, %v233
    %v235 = vpop.f32.mrb[0].mxu0
    %236 = vmatprep.mubr.f32.mxu0 0.0
    %237 = vmatmul.mubr.f32.gmra.mrb[0].mxu0 %v95
    %v238 = vpop.f32.mrb[0].mxu0
    %v239 = vadd.f32 %v46, %v238
    %v240 = vpop.f32.mrb[0].mxu0
    %241 = vdwg.mxu0
    %v242 = vmax.f32 %v164, 0.0
    %v243 = vmax.f32 %v169, 0.0
    %v244 = vmax.f32 %v174, 0.0
    %v245 = vmax.f32 %v179, 0.0
    %v246 = vmax.f32 %v184, 0.0
    %v247 = vmax.f32 %v189, 0.0
    %v248 = vmax.f32 %v194, 0.0
    %v249 = vmax.f32 %v199, 0.0
    %v250 = vmax.f32 %v204, 0.0
    %v251 = vmax.f32 %v209, 0.0
    %v252 = vmax.f32 %v214, 0.0
    %v253 = vmax.f32 %v219, 0.0
    %v254 = vmax.f32 %v224, 0.0
    %v255 = vmax.f32 %v229, 0.0
    %v256 = vmax.f32 %v234, 0.0
    %v257 = vmax.f32 %v239, 0.0
    %v258 = vld [vmem:[%s3] sm:$0xff]
    %v259 = vld [vmem:[%s4] sm:$0xff]
    %261 = vset.pattern.permute.xlu0 0
    %262 = vperm.xlu0 %261, %v259
    %v263 = vpop.permute.xlu0 %262
    %265 = vmatprep.subr.mxu0 0.0
    %266 = vmatpush1.xpose.msra.mxu0 %v242
    %267 = vmatprep.subr.mxu0 0.0
    %268 = vmatpush1.xpose.msra.mxu0 %v243
    %269 = vmatprep.subr.mxu0 0.0
    %270 = vmatpush1.xpose.msra.mxu0 %v244
    %271 = vmatprep.subr.mxu0 0.0
    %272 = vmatpush1.xpose.msra.mxu0 %v245
    %273 = vmatprep.subr.mxu0 0.0
    %274 = vmatpush1.xpose.msra.mxu0 %v246
    %275 = vmatprep.subr.mxu0 0.0
    %276 = vmatpush1.xpose.msra.mxu0 %v247
    %277 = vmatprep.subr.mxu0 0.0
    %278 = vmatpush1.xpose.msra.mxu0 %v248
    %279 = vmatprep.subr.mxu0 0.0
    %280 = vmatpush1.xpose.msra.mxu0 %v249
    %281 = vmatprep.subr.mxu0 0.0
    %282 = vmatpush1.xpose.msra.mxu0 %v250
    %283 = vmatprep.subr.mxu0 0.0
    %284 = vmatpush1.xpose.msra.mxu0 %v251
    %285 = vmatprep.subr.mxu0 0.0
    %286 = vmatpush1.xpose.msra.mxu0 %v252
    %287 = vmatprep.subr.mxu0 0.0
    %288 = vmatpush1.xpose.msra.mxu0 %v253
    %289 = vmatprep.subr.mxu0 0.0
    %290 = vmatpush1.xpose.msra.mxu0 %v254
    %291 = vmatprep.subr.mxu0 0.0
    %292 = vmatpush1.xpose.msra.mxu0 %v255
    %293 = vmatprep.subr.mxu0 0.0
    %294 = vmatpush1.xpose.msra.mxu0 %v256
    %295 = vmatprep.subr.mxu0 0.0
    %296 = vmatpush1.xpose.msra.mxu0 %v257
    %297 = vmatprep.subr.mxu0 0.0
    %298 = vmatpush1.xpose.msra.mxu0 0.0
    %299 = vmatprep.subr.mxu0 0.0
    %300 = vmatpush1.xpose.msra.mxu0 0.0
    %301 = vmatprep.subr.mxu0 0.0
    %302 = vmatpush1.xpose.msra.mxu0 0.0
    %303 = vmatprep.subr.mxu0 0.0
    %304 = vmatpush1.xpose.msra.mxu0 0.0
    %305 = vmatprep.subr.mxu0 0.0
    %306 = vmatpush1.xpose.msra.mxu0 0.0
    %307 = vmatprep.subr.mxu0 0.0
    %308 = vmatpush1.xpose.msra.mxu0 0.0
    %309 = vmatprep.subr.mxu0 0.0
    %310 = vmatpush1.xpose.msra.mxu0 0.0
    %311 = vmatprep.subr.mxu0 0.0
    %312 = vmatpush1.xpose.msra.mxu0 0.0
    %313 = vmatprep.subr.mxu0 0.0
    %314 = vmatpush1.xpose.msra.mxu0 0.0
    %315 = vmatprep.subr.mxu0 0.0
    %316 = vmatpush1.xpose.msra.mxu0 0.0
    %317 = vmatprep.subr.mxu0 0.0
    %318 = vmatpush1.xpose.msra.mxu0 0.0
    %319 = vmatprep.subr.mxu0 0.0
    %320 = vmatpush1.xpose.msra.mxu0 0.0
    %321 = vmatprep.subr.mxu0 0.0
    %322 = vmatpush1.xpose.msra.mxu0 0.0
    %323 = vmatprep.subr.mxu0 0.0
    %324 = vmatpush1.xpose.msra.mxu0 0.0
    %325 = vmatprep.subr.mxu0 0.0
    %326 = vmatpush1.xpose.msra.mxu0 0.0
    %327 = vmatprep.subr.mxu0 0.0
    %328 = vmatpush1.xpose.msra.mxu0 0.0
    %329 = vmatprep.mubr.f32.mxu0 0.0
    %330 = vmatmul.mubr.f32.gmra.mrb[0].mxu0 %v258
    %v331 = vpop.f32.mrb[0].mxu0
    %v332 = vadd.f32 %v263, %v331
    %v333 = vpop.f32.mrb[0].mxu0
    %334 = vdwg.mxu0
    %335 = vst [vmem:[#allocation2] sm:$0xff] %v332
    // Predicated region
    $region22: #{tpu_custom_call.1} parent=1 // pred_check
      _
    $region23: #{tpu_custom_call.1} parent=1 // pred_check_branch
      %337 = sbr.rel (0) target = $region25
    $region24: #{tpu_custom_call.1} parent=1 // pred_region
      %s339 = ssub.s32 128, 128
      %340 = vsyncadd [#allocation3], %s339
      %s342 = sshll.u32 [#allocation2], 4
      %s343 = int_to_ptr.vmem [resolvable:$true] %s342
      %345 = dma.vmem_to_hbm [thread:$0]  %s343, 128, %s5, [#allocation3]
    $region25: #{tpu_custom_call.1} parent=1 // pred_fallthru
      _
    // Predicated region
    $region26: #{tpu_custom_call.1} parent=1 // pred_check
      _
    $region27: #{tpu_custom_call.1} parent=1 // pred_check_branch
      %347 = sbr.rel (0) target = $region29
    $region28: #{tpu_custom_call.1} parent=1 // pred_region
      %348 = dma.done [#allocation3], 128
    $region29: #{tpu_custom_call.1} parent=1 // pred_fallthru
      _
    %349 = vsyncpa [#allocation3], 1

</llo_original>
